<compile_context>
chip_gen: v7x
topology: tpu7x:2x2x1
jax: 0.10.0
libtpu: 0.0.40
codegen_flags: <defaults>
</compile_context>

<pallas_src>
import functools

import jax
import jax.numpy as jnp
from jax import lax
from jax.experimental import pallas as pl
from jax.experimental.pallas import tpu as pltpu


def keyval_kernel(x_ref, w_ref, b_ref, pred_ref, idx_ref, *, num_classes):
    # x_ref   : (B, tk)  f32   block of the flattened input
    # w_ref   : (tk, N)  f32   block of the pre-transposed fc weight
    # b_ref   : (1, N)   f32   fc bias
    # pred_ref: (B, N)   f32   logits output; doubles as the K accumulator
    # idx_ref : (B, 1)   i32   argmax output
    k = pl.program_id(0)

    @pl.when(k == 0)
    def _():
        # Initialize the resident accumulator with the bias (broadcast rows).
        pred_ref[...] = jnp.broadcast_to(b_ref[...], pred_ref.shape)

    pred_ref[...] += jnp.dot(x_ref[...], w_ref[...],
                             preferred_element_type=jnp.float32)

    @pl.when(k == pl.num_programs(0) - 1)
    def _():
        logits = pred_ref[...]                                   # (B, N)
        col = lax.broadcasted_iota(jnp.int32, logits.shape, 1)
        row_max = jnp.max(logits, axis=1, keepdims=True)         # (B, 1)
        hit = logits >= row_max
        # First index attaining the max (matches torch/jnp argmax tie rule).
        first = jnp.min(jnp.where(hit, col, num_classes),
                        axis=1, keepdims=True)
        idx_ref[...] = first.astype(jnp.int32)


def prepare_params(fc_weight, fc_bias):
    """One-time parameter prep, hoisted out of the per-call path.

    fc_weight: (N, D) as stored by nn.Linear; fc_bias: (N,).
    Returns the (D, N) transposed weight and a (1, N) bias.
    """
    wt = jnp.asarray(fc_weight).T            # (D, N): dense (tk, N) DMA blocks
    bp = jnp.asarray(fc_bias).reshape(1, -1)  # (1, N)
    # TODO(synk): optionally cast wt to bfloat16 (halves the dominant weight
    # DMA; f32 accumulation kept) once the numerics change is signed off.
    return wt, bp


def _choose_tk(D, B, vmem_budget_bytes=12 << 20):
    """Largest K tile whose double-buffered blocks fit the VMEM budget.

    In VMEM the (tk, N) weight block is lane-padded to 128, so the per-tk
    footprint is ~2 * 4 * (128 + B) bytes (double-buffered w + x blocks).
    The 12 MiB budget is conservative for v5e/v6e (128 MiB VMEM) and for
    v7x (64 MiB physical / 32 MiB default scoped VMEM).
    """
    per_tk = 2 * 4 * (128 + B)
    max_tk = (vmem_budget_bytes // per_tk) // 128 * 128
    if max_tk <= 0 or D <= max_tk:
        return D                              # single grid step: whole K fits
    for tk in range(max_tk, 0, -128):         # largest mult-of-128 divisor
        if D % tk == 0:
            return tk
    return D                                  # pathological D: single block


def keyval_forward(f, wt, bp):
    """f: (B, C, H, W) f32; wt: (D, N) pre-transposed weight; bp: (1, N)."""
    B = f.shape[0]
    D, N = wt.shape
    x = f.reshape(B, D)                    # same flattening order as torch.view

    tk = _choose_tk(D, B)
    grid = (D // tk,)

    kernel = functools.partial(keyval_kernel, num_classes=N)

    cost = pl.CostEstimate(
        flops=2 * B * D * N,
        transcendentals=0,
        bytes_accessed=(B * D + D * N + N + B * N) * 4 + B * 4)

    # NOTE: at larger B, add a leading "parallel" batch-tile grid axis so
    # v7x's two TensorCores split the work; at B=2 it is pure overhead.
    predict, idx = pl.pallas_call(
        kernel,
        out_shape=(jax.ShapeDtypeStruct((B, N), jnp.float32),
                   jax.ShapeDtypeStruct((B, 1), jnp.int32)),
        grid_spec=pltpu.PrefetchScalarGridSpec(
            num_scalar_prefetch=0,
            grid=grid,
            in_specs=[
                pl.BlockSpec((B, tk), lambda k: (0, k)),
                pl.BlockSpec((tk, N), lambda k: (k, 0)),
                pl.BlockSpec((1, N), lambda k: (0, 0)),
            ],
            out_specs=[
                pl.BlockSpec((B, N), lambda k: (0, 0)),
                pl.BlockSpec((B, 1), lambda k: (0, 0)),
            ]),
        compiler_params=pltpu.CompilerParams(
            dimension_semantics=("arbitrary",)),
        cost_estimate=cost,
    )(x, wt, bp)

    key_idx = idx[:, 0]                    # (B,) int32 (torch returns int64)
    return predict, key_idx


def keyval_reference(f, fc_weight, fc_bias):
    """Pure-JAX reference matching the PyTorch module."""
    flat = f.reshape(f.shape[0], -1)
    predict = flat @ fc_weight.T + fc_bias
    key_idx = jnp.argmax(predict, axis=1)
    return predict, key_idx


if __name__ == "__main__":
    # Small shapes consistent with the module: 16x16 spatial, 15 classes.
    B, C, H, W = 2, 4, 16, 16
    N = 15
    D = C * H * W                                       # 1024

    key = jax.random.PRNGKey(0)
    kx, kw, kb = jax.random.split(key, 3)
    f = jax.random.normal(kx, (B, C, H, W), jnp.float32)
    fc_weight = jax.random.normal(kw, (N, D), jnp.float32) * 0.05
    fc_bias = jax.random.normal(kb, (N,), jnp.float32) * 0.05

    # One-time parameter prep (would happen at module-init time in practice).
    wt, bp = prepare_params(fc_weight, fc_bias)
    wt, bp = jax.block_until_ready((wt, bp))

    predict, key_idx = keyval_forward(f, wt, bp)
    predict, key_idx = jax.block_until_ready((predict, key_idx))

    ref_p, ref_i = keyval_reference(f, fc_weight, fc_bias)
    assert predict.shape == (B, N)
    assert key_idx.shape == (B,)
    assert jnp.allclose(predict, ref_p, atol=1e-4, rtol=1e-4), (
        float(jnp.max(jnp.abs(predict - ref_p))))
    assert jnp.array_equal(key_idx, ref_i.astype(jnp.int32))

    print("KERNEL_OK")
</pallas_src>

<mosaic_0001>
module attributes {stable_mosaic.version = 11 : i64} {
  func.func @keyval_kernel(%arg0: i32, %arg1: memref<2x1024xf32, #tpu.memory_space<vmem>>, %arg2: memref<1024x15xf32, #tpu.memory_space<vmem>>, %arg3: memref<1x15xf32, #tpu.memory_space<vmem>>, %arg4: memref<2x15xf32, #tpu.memory_space<vmem>>, %arg5: memref<2x1xi32, #tpu.memory_space<vmem>>) attributes {dimension_semantics = [#tpu.dimension_semantics<arbitrary>], iteration_bounds = array<i64: 1>, scalar_prefetch = 0 : i64, scratch_operands = 0 : i64, tpu.core_type = #tpu.core_type<tc>, window_params = [{transform_indices = @transform_0, window_bounds = array<i64: 2, 1024>}, {transform_indices = @transform_1, window_bounds = array<i64: 1024, 15>}, {pipeline_mode = #tpu.pipeline_mode<synchronous>, transform_indices = @transform_2, window_bounds = array<i64: 1, 15>}, {pipeline_mode = #tpu.pipeline_mode<synchronous>, transform_indices = @transform_3, window_bounds = array<i64: 2, 15>}, {pipeline_mode = #tpu.pipeline_mode<synchronous>, transform_indices = @transform_4, window_bounds = array<i64: 2, 1>}]} {
    %c0_i32 = arith.constant 0 : i32
    %0 = arith.cmpi eq, %arg0, %c0_i32 : i32
    %1 = arith.extui %0 : i1 to i32
    %c0_i32_0 = arith.constant 0 : i32
    %2 = arith.cmpi ne, %1, %c0_i32_0 : i32
    scf.if %2 {
      %c0_10 = arith.constant 0 : index
      %c0_11 = arith.constant 0 : index
      %12 = vector.load %arg3[%c0_10, %c0_11] : memref<1x15xf32, #tpu.memory_space<vmem>>, vector<1x15xf32>
      %13 = vector.shape_cast %12 : vector<1x15xf32> to vector<1x15xf32>
      %14 = vector.broadcast %13 : vector<1x15xf32> to vector<2x15xf32>
      %c0_12 = arith.constant 0 : index
      %c0_13 = arith.constant 0 : index
      %15 = vector.load %arg4[%c0_12, %c0_13] : memref<2x15xf32, #tpu.memory_space<vmem>>, vector<2x15xf32>
      tpu.vector_store %arg4[%c0_12, %c0_13], %14 {strides = array<i32>} : memref<2x15xf32, #tpu.memory_space<vmem>>, vector<2x15xf32>,
    } else {
    }
    %c0 = arith.constant 0 : index
    %c0_1 = arith.constant 0 : index
    %3 = vector.load %arg4[%c0, %c0_1] : memref<2x15xf32, #tpu.memory_space<vmem>>, vector<2x15xf32>
    %c0_2 = arith.constant 0 : index
    %c0_3 = arith.constant 0 : index
    %4 = vector.load %arg1[%c0_2, %c0_3] : memref<2x1024xf32, #tpu.memory_space<vmem>>, vector<2x1024xf32>
    %c0_4 = arith.constant 0 : index
    %c0_5 = arith.constant 0 : index
    %5 = vector.load %arg2[%c0_4, %c0_5] : memref<1024x15xf32, #tpu.memory_space<vmem>>, vector<1024x15xf32>
    %cst = arith.constant dense<0.000000e+00> : vector<2x15xf32>
    %6 = tpu.matmul %4, %5, %cst {dimension_numbers = #tpu.dot_dimension_numbers<[1], [0], [0], [1], [0, 0, 1, 1], [], []>} : vector<2x1024xf32>, vector<1024x15xf32>, vector<2x15xf32> -> vector<2x15xf32>
    %7 = arith.addf %3, %6 : vector<2x15xf32>
    %c0_6 = arith.constant 0 : index
    %c0_7 = arith.constant 0 : index
    %8 = vector.load %arg4[%c0_6, %c0_7] : memref<2x15xf32, #tpu.memory_space<vmem>>, vector<2x15xf32>
    tpu.vector_store %arg4[%c0_6, %c0_7], %7 {strides = array<i32>} : memref<2x15xf32, #tpu.memory_space<vmem>>, vector<2x15xf32>,
    %c0_i32_8 = arith.constant 0 : i32
    %9 = arith.cmpi eq, %arg0, %c0_i32_8 : i32
    %10 = arith.extui %9 : i1 to i32
    %c0_i32_9 = arith.constant 0 : i32
    %11 = arith.cmpi ne, %10, %c0_i32_9 : i32
    scf.if %11 {
      %c0_10 = arith.constant 0 : index
      %c0_11 = arith.constant 0 : index
      %12 = vector.load %arg4[%c0_10, %c0_11] : memref<2x15xf32, #tpu.memory_space<vmem>>, vector<2x15xf32>
      %13 = tpu.iota {dimensions = array<i32: 1>} : vector<2x15xi32>
      %cst_12 = arith.constant dense<0xFF800000> : vector<2xf32>
      %14 = vector.multi_reduction <maximumf>, %12, %cst_12 [1] : vector<2x15xf32> to vector<2xf32>
      %15 = vector.shape_cast %14 : vector<2xf32> to vector<2x1xf32>
      %16 = vector.broadcast %15 : vector<2x1xf32> to vector<2x15xf32>
      %17 = arith.cmpf oge, %12, %16 : vector<2x15xf32>
      %c15_i32 = arith.constant 15 : i32
      %18 = vector.broadcast %c15_i32 : i32 to vector<2x15xi32>
      %19 = arith.select %17, %13, %18 : vector<2x15xi1>, vector<2x15xi32>
      %cst_13 = arith.constant dense<2147483647> : vector<2xi32>
      %20 = vector.multi_reduction <minsi>, %19, %cst_13 [1] : vector<2x15xi32> to vector<2xi32>
      %21 = vector.shape_cast %20 : vector<2xi32> to vector<2x1xi32>
      %c0_14 = arith.constant 0 : index
      %c0_15 = arith.constant 0 : index
      %22 = vector.load %arg5[%c0_14, %c0_15] : memref<2x1xi32, #tpu.memory_space<vmem>>, vector<2x1xi32>
      tpu.vector_store %arg5[%c0_14, %c0_15], %21 {strides = array<i32>} : memref<2x1xi32, #tpu.memory_space<vmem>>, vector<2x1xi32>,
    } else {
    }
    return
  }
  func.func @transform_0(%arg0: i32) -> (i32, i32) {
    %c0_i32 = arith.constant 0 : i32
    %c0_i32_0 = arith.constant 0 : i32
    return %c0_i32, %arg0 : i32, i32
  }
  func.func @transform_1(%arg0: i32) -> (i32, i32) {
    %c0_i32 = arith.constant 0 : i32
    %c0_i32_0 = arith.constant 0 : i32
    return %arg0, %c0_i32 : i32, i32
  }
  func.func @transform_2(%arg0: i32) -> (i32, i32) {
    %c0_i32 = arith.constant 0 : i32
    %c0_i32_0 = arith.constant 0 : i32
    %c0_i32_1 = arith.constant 0 : i32
    return %c0_i32, %c0_i32_0 : i32, i32
  }
  func.func @transform_3(%arg0: i32) -> (i32, i32) {
    %c0_i32 = arith.constant 0 : i32
    %c0_i32_0 = arith.constant 0 : i32
    %c0_i32_1 = arith.constant 0 : i32
    return %c0_i32, %c0_i32_0 : i32, i32
  }
  func.func @transform_4(%arg0: i32) -> (i32, i32) {
    %c0_i32 = arith.constant 0 : i32
    %c0_i32_0 = arith.constant 0 : i32
    %c0_i32_1 = arith.constant 0 : i32
    return %c0_i32, %c0_i32_0 : i32, i32
  }
}

</mosaic_0001>

<llo_original>
// kernel: tpu_custom_call.1
$region0: #{tpu_custom_call.1}
  #allocation0 [shape = 'u32[]', space=smem, size = 0x4, offset = 0x4, fixed_abs, tag = 'smem constant byte address 0x4 - core index']
  #allocation1 [shape = 'u32[144,128]{1,0:T(1,128)}', space=vmem, size = 0x12000, scoped, tag = 'internal scratch']
  %s0 = inlined_call_operand.vmem [shape: f32[2,1024], index: 0, kind: input, shape index: {}]
  %s1 = inlined_call_operand.vmem [shape: f32[1024,15], index: 1, kind: input, shape index: {}]
  %s2 = inlined_call_operand.vmem [shape: f32[1,15], index: 2, kind: input, shape index: {}]
  %s3 = inlined_call_operand.hbm [shape: f32[2,15], index: 3, kind: output, shape index: {0}]
  %s4 = inlined_call_operand.vmem [shape: s32[2,1], index: 4, kind: output, shape index: {1}]
  %5 = xla_tuple %s3, %s4
  %s6 = sld [smem:[#allocation0]]
  $region38: #{tpu_custom_call.1} parent=0
    _
  %s8 = ssub.s32 1, %s6
  %s9 = scalar_select 0, %s8, %s6
  $region1: #{tpu_custom_call.1} parent=0
    #allocation2 [shape = 'u8[1024]{0}', space=vmem, size = 0x400, scoped, tag = 'output window, operand 0, single buffered']
    #allocation3 [shape = 's32[1]{0}', space=sflag, size = 0x4, scoped, tag = 'scoped memory for tpu_custom_call.1']
    %10 = vsyncpa [#allocation3], 0
    // Predicated region
    $region2: #{tpu_custom_call.1} parent=1 // pred_check
      _
    $region3: #{tpu_custom_call.1} parent=1 // pred_check_branch
      %12 = sbr.rel (0) target = $region5
    $region4: #{tpu_custom_call.1} parent=1 // pred_region
      _
    $region5: #{tpu_custom_call.1} parent=1 // pred_fallthru
      _
    // Predicated region
    $region6: #{tpu_custom_call.1} parent=1 // pred_check
      _
    $region7: #{tpu_custom_call.1} parent=1 // pred_check_branch
      %14 = sbr.rel (0) target = $region9
    $region8: #{tpu_custom_call.1} parent=1 // pred_region
      _
    $region9: #{tpu_custom_call.1} parent=1 // pred_fallthru
      _
    // Predicated region
    $region10: #{tpu_custom_call.1} parent=1 // pred_check
      _
    $region11: #{tpu_custom_call.1} parent=1 // pred_check_branch
      %16 = sbr.rel (0) target = $region13
    $region12: #{tpu_custom_call.1} parent=1 // pred_region
      _
    $region13: #{tpu_custom_call.1} parent=1 // pred_fallthru
      _
    %p17 = scmp.eq.s32.totalorder 0, 0
    // Predicated region
    $region14: #{tpu_custom_call.1} parent=1 // pred_check
      %p18 = pneg %p17
    $region15: #{tpu_custom_call.1} parent=1 // pred_check_branch
      %20 = sbr.rel (%p18) target = $region17
    $region16: #{tpu_custom_call.1} parent=1 // pred_region
      %v21 = vld [vmem:[%s2] sm:$0x1]
      %v23 = vlaneseq
      %v24 = vshrl.u32 %v23, 7
      %v25 = vsub.s32 0, %v24
      %v26 = vrot.slane %v21, %v25
      %vm28 = vcmask 115712
      %29 = vst.msk [vmem:[#allocation2] sm:$0x3] %vm28, %v26
    $region17: #{tpu_custom_call.1} parent=1 // pred_fallthru
      _
    %v30 = vld [vmem:[#allocation2] sm:$0x3]
    %v31 = vld [vmem:[%s0] sm:$0xff]
    %v32 = vld [vmem:[%s0 + $0x8] sm:$0xff]
    %v33 = vld [vmem:[%s1] sm:$0xff]
    %v34 = vld [vmem:[%s1 + $0x8] sm:$0xff]
    %v35 = vld [vmem:[%s1 + $0x10] sm:$0xff]
    %v36 = vld [vmem:[%s1 + $0x18] sm:$0xff]
    %v37 = vld [vmem:[%s1 + $0x20] sm:$0xff]
    %v38 = vld [vmem:[%s1 + $0x28] sm:$0xff]
    %v39 = vld [vmem:[%s1 + $0x30] sm:$0xff]
    %v40 = vld [vmem:[%s1 + $0x38] sm:$0xff]
    %v41 = vld [vmem:[%s1 + $0x40] sm:$0xff]
    %v42 = vld [vmem:[%s1 + $0x48] sm:$0xff]
    %v43 = vld [vmem:[%s1 + $0x50] sm:$0xff]
    %v44 = vld [vmem:[%s1 + $0x58] sm:$0xff]
    %v45 = vld [vmem:[%s1 + $0x60] sm:$0xff]
    %v46 = vld [vmem:[%s1 + $0x68] sm:$0xff]
    %v47 = vld [vmem:[%s1 + $0x70] sm:$0xff]
    %v48 = vld [vmem:[%s1 + $0x78] sm:$0xff]
    %v49 = vld [vmem:[%s1 + $0x80] sm:$0xff]
    %v50 = vld [vmem:[%s1 + $0x88] sm:$0xff]
    %v51 = vld [vmem:[%s1 + $0x90] sm:$0xff]
    %v52 = vld [vmem:[%s1 + $0x98] sm:$0xff]
    %v53 = vld [vmem:[%s1 + $0xa0] sm:$0xff]
    %v54 = vld [vmem:[%s1 + $0xa8] sm:$0xff]
    %v55 = vld [vmem:[%s1 + $0xb0] sm:$0xff]
    %v56 = vld [vmem:[%s1 + $0xb8] sm:$0xff]
    %v57 = vld [vmem:[%s1 + $0xc0] sm:$0xff]
    %v58 = vld [vmem:[%s1 + $0xc8] sm:$0xff]
    %v59 = vld [vmem:[%s1 + $0xd0] sm:$0xff]
    %v60 = vld [vmem:[%s1 + $0xd8] sm:$0xff]
    %v61 = vld [vmem:[%s1 + $0xe0] sm:$0xff]
    %v62 = vld [vmem:[%s1 + $0xe8] sm:$0xff]
    %v63 = vld [vmem:[%s1 + $0xf0] sm:$0xff]
    %v64 = vld [vmem:[%s1 + $0xf8] sm:$0xff]
    %v65 = vld [vmem:[%s1 + $0x100] sm:$0xff]
    %v66 = vld [vmem:[%s1 + $0x108] sm:$0xff]
    %v67 = vld [vmem:[%s1 + $0x110] sm:$0xff]
    %v68 = vld [vmem:[%s1 + $0x118] sm:$0xff]
    %v69 = vld [vmem:[%s1 + $0x120] sm:$0xff]
    %v70 = vld [vmem:[%s1 + $0x128] sm:$0xff]
    %v71 = vld [vmem:[%s1 + $0x130] sm:$0xff]
    %v72 = vld [vmem:[%s1 + $0x138] sm:$0xff]
    %v73 = vld [vmem:[%s1 + $0x140] sm:$0xff]
    %v74 = vld [vmem:[%s1 + $0x148] sm:$0xff]
    %v75 = vld [vmem:[%s1 + $0x150] sm:$0xff]
    %v76 = vld [vmem:[%s1 + $0x158] sm:$0xff]
    %v77 = vld [vmem:[%s1 + $0x160] sm:$0xff]
    %v78 = vld [vmem:[%s1 + $0x168] sm:$0xff]
    %v79 = vld [vmem:[%s1 + $0x170] sm:$0xff]
    %v80 = vld [vmem:[%s1 + $0x178] sm:$0xff]
    %v81 = vld [vmem:[%s1 + $0x180] sm:$0xff]
    %v82 = vld [vmem:[%s1 + $0x188] sm:$0xff]
    %v83 = vld [vmem:[%s1 + $0x190] sm:$0xff]
    %v84 = vld [vmem:[%s1 + $0x198] sm:$0xff]
    %v85 = vld [vmem:[%s1 + $0x1a0] sm:$0xff]
    %v86 = vld [vmem:[%s1 + $0x1a8] sm:$0xff]
    %v87 = vld [vmem:[%s1 + $0x1b0] sm:$0xff]
    %v88 = vld [vmem:[%s1 + $0x1b8] sm:$0xff]
    %v89 = vld [vmem:[%s1 + $0x1c0] sm:$0xff]
    %v90 = vld [vmem:[%s1 + $0x1c8] sm:$0xff]
    %v91 = vld [vmem:[%s1 + $0x1d0] sm:$0xff]
    %v92 = vld [vmem:[%s1 + $0x1d8] sm:$0xff]
    %v93 = vld [vmem:[%s1 + $0x1e0] sm:$0xff]
    %v94 = vld [vmem:[%s1 + $0x1e8] sm:$0xff]
    %v95 = vld [vmem:[%s1 + $0x1f0] sm:$0xff]
    %v96 = vld [vmem:[%s1 + $0x1f8] sm:$0xff]
    %v97 = vld [vmem:[%s1 + $0x200] sm:$0xff]
    %v98 = vld [vmem:[%s1 + $0x208] sm:$0xff]
    %v99 = vld [vmem:[%s1 + $0x210] sm:$0xff]
    %v100 = vld [vmem:[%s1 + $0x218] sm:$0xff]
    %v101 = vld [vmem:[%s1 + $0x220] sm:$0xff]
    %v102 = vld [vmem:[%s1 + $0x228] sm:$0xff]
    %v103 = vld [vmem:[%s1 + $0x230] sm:$0xff]
    %v104 = vld [vmem:[%s1 + $0x238] sm:$0xff]
    %v105 = vld [vmem:[%s1 + $0x240] sm:$0xff]
    %v106 = vld [vmem:[%s1 + $0x248] sm:$0xff]
    %v107 = vld [vmem:[%s1 + $0x250] sm:$0xff]
    %v108 = vld [vmem:[%s1 + $0x258] sm:$0xff]
    %v109 = vld [vmem:[%s1 + $0x260] sm:$0xff]
    %v110 = vld [vmem:[%s1 + $0x268] sm:$0xff]
    %v111 = vld [vmem:[%s1 + $0x270] sm:$0xff]
    %v112 = vld [vmem:[%s1 + $0x278] sm:$0xff]
    %v113 = vld [vmem:[%s1 + $0x280] sm:$0xff]
    %v114 = vld [vmem:[%s1 + $0x288] sm:$0xff]
    %v115 = vld [vmem:[%s1 + $0x290] sm:$0xff]
    %v116 = vld [vmem:[%s1 + $0x298] sm:$0xff]
    %v117 = vld [vmem:[%s1 + $0x2a0] sm:$0xff]
    %v118 = vld [vmem:[%s1 + $0x2a8] sm:$0xff]
    %v119 = vld [vmem:[%s1 + $0x2b0] sm:$0xff]
    %v120 = vld [vmem:[%s1 + $0x2b8] sm:$0xff]
    %v121 = vld [vmem:[%s1 + $0x2c0] sm:$0xff]
    %v122 = vld [vmem:[%s1 + $0x2c8] sm:$0xff]
    %v123 = vld [vmem:[%s1 + $0x2d0] sm:$0xff]
    %v124 = vld [vmem:[%s1 + $0x2d8] sm:$0xff]
    %v125 = vld [vmem:[%s1 + $0x2e0] sm:$0xff]
    %v126 = vld [vmem:[%s1 + $0x2e8] sm:$0xff]
    %v127 = vld [vmem:[%s1 + $0x2f0] sm:$0xff]
    %v128 = vld [vmem:[%s1 + $0x2f8] sm:$0xff]
    %v129 = vld [vmem:[%s1 + $0x300] sm:$0xff]
    %v130 = vld [vmem:[%s1 + $0x308] sm:$0xff]
    %v131 = vld [vmem:[%s1 + $0x310] sm:$0xff]
    %v132 = vld [vmem:[%s1 + $0x318] sm:$0xff]
    %v133 = vld [vmem:[%s1 + $0x320] sm:$0xff]
    %v134 = vld [vmem:[%s1 + $0x328] sm:$0xff]
    %v135 = vld [vmem:[%s1 + $0x330] sm:$0xff]
    %v136 = vld [vmem:[%s1 + $0x338] sm:$0xff]
    %v137 = vld [vmem:[%s1 + $0x340] sm:$0xff]
    %v138 = vld [vmem:[%s1 + $0x348] sm:$0xff]
    %v139 = vld [vmem:[%s1 + $0x350] sm:$0xff]
    %v140 = vld [vmem:[%s1 + $0x358] sm:$0xff]
    %v141 = vld [vmem:[%s1 + $0x360] sm:$0xff]
    %v142 = vld [vmem:[%s1 + $0x368] sm:$0xff]
    %v143 = vld [vmem:[%s1 + $0x370] sm:$0xff]
    %v144 = vld [vmem:[%s1 + $0x378] sm:$0xff]
    %v145 = vld [vmem:[%s1 + $0x380] sm:$0xff]
    %v146 = vld [vmem:[%s1 + $0x388] sm:$0xff]
    %v147 = vld [vmem:[%s1 + $0x390] sm:$0xff]
    %v148 = vld [vmem:[%s1 + $0x398] sm:$0xff]
    %v149 = vld [vmem:[%s1 + $0x3a0] sm:$0xff]
    %v150 = vld [vmem:[%s1 + $0x3a8] sm:$0xff]
    %v151 = vld [vmem:[%s1 + $0x3b0] sm:$0xff]
    %v152 = vld [vmem:[%s1 + $0x3b8] sm:$0xff]
    %v153 = vld [vmem:[%s1 + $0x3c0] sm:$0xff]
    %v154 = vld [vmem:[%s1 + $0x3c8] sm:$0xff]
    %v155 = vld [vmem:[%s1 + $0x3d0] sm:$0xff]
    %v156 = vld [vmem:[%s1 + $0x3d8] sm:$0xff]
    %v157 = vld [vmem:[%s1 + $0x3e0] sm:$0xff]
    %v158 = vld [vmem:[%s1 + $0x3e8] sm:$0xff]
    %v159 = vld [vmem:[%s1 + $0x3f0] sm:$0xff]
    %v160 = vld [vmem:[%s1 + $0x3f8] sm:$0xff]
    %v163 = vcombine.high %v31, %v31
    %v165 = vunpack.c.l.s4 1983009808
    %v166 = vunpack.c.0.s8 %v165
    %v167 = vlaneseq
    %v168 = vshrl.u32 %v167, 7
    %v169 = vsub.s32 %v166, %v168
    %v170 = vrot.slane %v31, %v169
    %v172 = vunpack.c.l.s4 1983009808
    %v173 = vunpack.c.0.s8 %v172
    %v174 = vlaneseq
    %v175 = vshrl.u32 %v174, 7
    %v176 = vsub.s32 %v173, %v175
    %v177 = vrot.slane %v163, %v176
    %v178 = vcombine.high %v170, %v170
    %v179 = vcombine.high %v177, %v177
    %v180 = vcombine.high %v32, %v32
    %v182 = vunpack.c.l.s4 1983009808
    %v183 = vunpack.c.0.s8 %v182
    %v184 = vlaneseq
    %v185 = vshrl.u32 %v184, 7
    %v186 = vsub.s32 %v183, %v185
    %v187 = vrot.slane %v32, %v186
    %v189 = vunpack.c.l.s4 1983009808
    %v190 = vunpack.c.0.s8 %v189
    %v191 = vlaneseq
    %v192 = vshrl.u32 %v191, 7
    %v193 = vsub.s32 %v190, %v192
    %v194 = vrot.slane %v180, %v193
    %v195 = vcombine.high %v187, %v187
    %v196 = vcombine.high %v194, %v194
    %205 = vmatprep.subr.mxu0 0.0
    %206 = vmatpush1.msra.mxu0 %v33
    %207 = vmatprep.subr.mxu0 0.0
    %208 = vmatpush1.msra.mxu0 %v34
    %209 = vmatprep.subr.mxu0 0.0
    %210 = vmatpush1.msra.mxu0 %v35
    %211 = vmatprep.subr.mxu0 0.0
    %212 = vmatpush1.msra.mxu0 %v36
    %213 = vmatprep.subr.mxu0 0.0
    %214 = vmatpush1.msra.mxu0 %v37
    %215 = vmatprep.subr.mxu0 0.0
    %216 = vmatpush1.msra.mxu0 %v38
    %217 = vmatprep.subr.mxu0 0.0
    %218 = vmatpush1.msra.mxu0 %v39
    %219 = vmatprep.subr.mxu0 0.0
    %220 = vmatpush1.msra.mxu0 %v40
    %221 = vmatprep.subr.mxu0 0.0
    %222 = vmatpush1.msra.mxu0 %v41
    %223 = vmatprep.subr.mxu0 0.0
    %224 = vmatpush1.msra.mxu0 %v42
    %225 = vmatprep.subr.mxu0 0.0
    %226 = vmatpush1.msra.mxu0 %v43
    %227 = vmatprep.subr.mxu0 0.0
    %228 = vmatpush1.msra.mxu0 %v44
    %229 = vmatprep.subr.mxu0 0.0
    %230 = vmatpush1.msra.mxu0 %v45
    %231 = vmatprep.subr.mxu0 0.0
    %232 = vmatpush1.msra.mxu0 %v46
    %233 = vmatprep.subr.mxu0 0.0
    %234 = vmatpush1.msra.mxu0 %v47
    %235 = vmatprep.subr.mxu0 0.0
    %236 = vmatpush1.msra.mxu0 %v48
    %237 = vmatprep.subr.mxu0 0.0
    %238 = vmatpush1.msra.mxu0 %v49
    %239 = vmatprep.subr.mxu0 0.0
    %240 = vmatpush1.msra.mxu0 %v50
    %241 = vmatprep.subr.mxu0 0.0
    %242 = vmatpush1.msra.mxu0 %v51
    %243 = vmatprep.subr.mxu0 0.0
    %244 = vmatpush1.msra.mxu0 %v52
    %245 = vmatprep.subr.mxu0 0.0
    %246 = vmatpush1.msra.mxu0 %v53
    %247 = vmatprep.subr.mxu0 0.0
    %248 = vmatpush1.msra.mxu0 %v54
    %249 = vmatprep.subr.mxu0 0.0
    %250 = vmatpush1.msra.mxu0 %v55
    %251 = vmatprep.subr.mxu0 0.0
    %252 = vmatpush1.msra.mxu0 %v56
    %253 = vmatprep.subr.mxu0 0.0
    %254 = vmatpush1.msra.mxu0 %v57
    %255 = vmatprep.subr.mxu0 0.0
    %256 = vmatpush1.msra.mxu0 %v58
    %257 = vmatprep.subr.mxu0 0.0
    %258 = vmatpush1.msra.mxu0 %v59
    %259 = vmatprep.subr.mxu0 0.0
    %260 = vmatpush1.msra.mxu0 %v60
    %261 = vmatprep.subr.mxu0 0.0
    %262 = vmatpush1.msra.mxu0 %v61
    %263 = vmatprep.subr.mxu0 0.0
    %264 = vmatpush1.msra.mxu0 %v62
    %265 = vmatprep.subr.mxu0 0.0
    %266 = vmatpush1.msra.mxu0 %v63
    %267 = vmatprep.subr.mxu0 0.0
    %268 = vmatpush1.msra.mxu0 %v64
    %269 = vmatprep.mubr.f32.mxu0 %v178
    %270 = vmatmul.mubr.f32.gmra.mrb[0].mxu0 %v170
    %v271 = vpop.f32.mrb[0].mxu0
    %v272 = vadd.f32 0.0, %v271
    %v273 = vpop.f32.mrb[0].mxu0
    %274 = vdwg.mxu0
    %275 = vmatprep.subr.mxu0 0.0
    %276 = vmatpush1.msra.mxu0 %v65
    %277 = vmatprep.subr.mxu0 0.0
    %278 = vmatpush1.msra.mxu0 %v66
    %279 = vmatprep.subr.mxu0 0.0
    %280 = vmatpush1.msra.mxu0 %v67
    %281 = vmatprep.subr.mxu0 0.0
    %282 = vmatpush1.msra.mxu0 %v68
    %283 = vmatprep.subr.mxu0 0.0
    %284 = vmatpush1.msra.mxu0 %v69
    %285 = vmatprep.subr.mxu0 0.0
    %286 = vmatpush1.msra.mxu0 %v70
    %287 = vmatprep.subr.mxu0 0.0
    %288 = vmatpush1.msra.mxu0 %v71
    %289 = vmatprep.subr.mxu0 0.0
    %290 = vmatpush1.msra.mxu0 %v72
    %291 = vmatprep.subr.mxu0 0.0
    %292 = vmatpush1.msra.mxu0 %v73
    %293 = vmatprep.subr.mxu0 0.0
    %294 = vmatpush1.msra.mxu0 %v74
    %295 = vmatprep.subr.mxu0 0.0
    %296 = vmatpush1.msra.mxu0 %v75
    %297 = vmatprep.subr.mxu0 0.0
    %298 = vmatpush1.msra.mxu0 %v76
    %299 = vmatprep.subr.mxu0 0.0
    %300 = vmatpush1.msra.mxu0 %v77
    %301 = vmatprep.subr.mxu0 0.0
    %302 = vmatpush1.msra.mxu0 %v78
    %303 = vmatprep.subr.mxu0 0.0
    %304 = vmatpush1.msra.mxu0 %v79
    %305 = vmatprep.subr.mxu0 0.0
    %306 = vmatpush1.msra.mxu0 %v80
    %307 = vmatprep.subr.mxu0 0.0
    %308 = vmatpush1.msra.mxu0 %v81
    %309 = vmatprep.subr.mxu0 0.0
    %310 = vmatpush1.msra.mxu0 %v82
    %311 = vmatprep.subr.mxu0 0.0
    %312 = vmatpush1.msra.mxu0 %v83
    %313 = vmatprep.subr.mxu0 0.0
    %314 = vmatpush1.msra.mxu0 %v84
    %315 = vmatprep.subr.mxu0 0.0
    %316 = vmatpush1.msra.mxu0 %v85
    %317 = vmatprep.subr.mxu0 0.0
    %318 = vmatpush1.msra.mxu0 %v86
    %319 = vmatprep.subr.mxu0 0.0
    %320 = vmatpush1.msra.mxu0 %v87
    %321 = vmatprep.subr.mxu0 0.0
    %322 = vmatpush1.msra.mxu0 %v88
    %323 = vmatprep.subr.mxu0 0.0
    %324 = vmatpush1.msra.mxu0 %v89
    %325 = vmatprep.subr.mxu0 0.0
    %326 = vmatpush1.msra.mxu0 %v90
    %327 = vmatprep.subr.mxu0 0.0
    %328 = vmatpush1.msra.mxu0 %v91
    %329 = vmatprep.subr.mxu0 0.0
    %330 = vmatpush1.msra.mxu0 %v92
    %331 = vmatprep.subr.mxu0 0.0
    %332 = vmatpush1.msra.mxu0 %v93
    %333 = vmatprep.subr.mxu0 0.0
    %334 = vmatpush1.msra.mxu0 %v94
    %335 = vmatprep.subr.mxu0 0.0
    %336 = vmatpush1.msra.mxu0 %v95
    %337 = vmatprep.subr.mxu0 0.0
    %338 = vmatpush1.msra.mxu0 %v96
    %339 = vmatprep.mubr.f32.mxu0 %v179
    %340 = vmatmul.mubr.f32.gmra.mrb[0].mxu0 %v177
    %v341 = vpop.f32.mrb[0].mxu0
    %v342 = vadd.f32 %v272, %v341
    %v343 = vpop.f32.mrb[0].mxu0
    %344 = vdwg.mxu0
    %345 = vmatprep.subr.mxu0 0.0
    %346 = vmatpush1.msra.mxu0 %v97
    %347 = vmatprep.subr.mxu0 0.0
    %348 = vmatpush1.msra.mxu0 %v98
    %349 = vmatprep.subr.mxu0 0.0
    %350 = vmatpush1.msra.mxu0 %v99
    %351 = vmatprep.subr.mxu0 0.0
    %352 = vmatpush1.msra.mxu0 %v100
    %353 = vmatprep.subr.mxu0 0.0
    %354 = vmatpush1.msra.mxu0 %v101
    %355 = vmatprep.subr.mxu0 0.0
    %356 = vmatpush1.msra.mxu0 %v102
    %357 = vmatprep.subr.mxu0 0.0
    %358 = vmatpush1.msra.mxu0 %v103
    %359 = vmatprep.subr.mxu0 0.0
    %360 = vmatpush1.msra.mxu0 %v104
    %361 = vmatprep.subr.mxu0 0.0
    %362 = vmatpush1.msra.mxu0 %v105
    %363 = vmatprep.subr.mxu0 0.0
    %364 = vmatpush1.msra.mxu0 %v106
    %365 = vmatprep.subr.mxu0 0.0
    %366 = vmatpush1.msra.mxu0 %v107
    %367 = vmatprep.subr.mxu0 0.0
    %368 = vmatpush1.msra.mxu0 %v108
    %369 = vmatprep.subr.mxu0 0.0
    %370 = vmatpush1.msra.mxu0 %v109
    %371 = vmatprep.subr.mxu0 0.0
    %372 = vmatpush1.msra.mxu0 %v110
    %373 = vmatprep.subr.mxu0 0.0
    %374 = vmatpush1.msra.mxu0 %v111
    %375 = vmatprep.subr.mxu0 0.0
    %376 = vmatpush1.msra.mxu0 %v112
    %377 = vmatprep.subr.mxu0 0.0
    %378 = vmatpush1.msra.mxu0 %v113
    %379 = vmatprep.subr.mxu0 0.0
    %380 = vmatpush1.msra.mxu0 %v114
    %381 = vmatprep.subr.mxu0 0.0
    %382 = vmatpush1.msra.mxu0 %v115
    %383 = vmatprep.subr.mxu0 0.0
    %384 = vmatpush1.msra.mxu0 %v116
    %385 = vmatprep.subr.mxu0 0.0
    %386 = vmatpush1.msra.mxu0 %v117
    %387 = vmatprep.subr.mxu0 0.0
    %388 = vmatpush1.msra.mxu0 %v118
    %389 = vmatprep.subr.mxu0 0.0
    %390 = vmatpush1.msra.mxu0 %v119
    %391 = vmatprep.subr.mxu0 0.0
    %392 = vmatpush1.msra.mxu0 %v120
    %393 = vmatprep.subr.mxu0 0.0
    %394 = vmatpush1.msra.mxu0 %v121
    %395 = vmatprep.subr.mxu0 0.0
    %396 = vmatpush1.msra.mxu0 %v122
    %397 = vmatprep.subr.mxu0 0.0
    %398 = vmatpush1.msra.mxu0 %v123
    %399 = vmatprep.subr.mxu0 0.0
    %400 = vmatpush1.msra.mxu0 %v124
    %401 = vmatprep.subr.mxu0 0.0
    %402 = vmatpush1.msra.mxu0 %v125
    %403 = vmatprep.subr.mxu0 0.0
    %404 = vmatpush1.msra.mxu0 %v126
    %405 = vmatprep.subr.mxu0 0.0
    %406 = vmatpush1.msra.mxu0 %v127
    %407 = vmatprep.subr.mxu0 0.0
    %408 = vmatpush1.msra.mxu0 %v128
    %409 = vmatprep.mubr.f32.mxu0 %v195
    %410 = vmatmul.mubr.f32.gmra.mrb[0].mxu0 %v187
    %v411 = vpop.f32.mrb[0].mxu0
    %v412 = vadd.f32 %v342, %v411
    %v413 = vpop.f32.mrb[0].mxu0
    %414 = vdwg.mxu0
    %415 = vmatprep.subr.mxu0 0.0
    %416 = vmatpush1.msra.mxu0 %v129
    %417 = vmatprep.subr.mxu0 0.0
    %418 = vmatpush1.msra.mxu0 %v130
    %419 = vmatprep.subr.mxu0 0.0
    %420 = vmatpush1.msra.mxu0 %v131
    %421 = vmatprep.subr.mxu0 0.0
    %422 = vmatpush1.msra.mxu0 %v132
    %423 = vmatprep.subr.mxu0 0.0
    %424 = vmatpush1.msra.mxu0 %v133
    %425 = vmatprep.subr.mxu0 0.0
    %426 = vmatpush1.msra.mxu0 %v134
    %427 = vmatprep.subr.mxu0 0.0
    %428 = vmatpush1.msra.mxu0 %v135
    %429 = vmatprep.subr.mxu0 0.0
    %430 = vmatpush1.msra.mxu0 %v136
    %431 = vmatprep.subr.mxu0 0.0
    %432 = vmatpush1.msra.mxu0 %v137
    %433 = vmatprep.subr.mxu0 0.0
    %434 = vmatpush1.msra.mxu0 %v138
    %435 = vmatprep.subr.mxu0 0.0
    %436 = vmatpush1.msra.mxu0 %v139
    %437 = vmatprep.subr.mxu0 0.0
    %438 = vmatpush1.msra.mxu0 %v140
    %439 = vmatprep.subr.mxu0 0.0
    %440 = vmatpush1.msra.mxu0 %v141
    %441 = vmatprep.subr.mxu0 0.0
    %442 = vmatpush1.msra.mxu0 %v142
    %443 = vmatprep.subr.mxu0 0.0
    %444 = vmatpush1.msra.mxu0 %v143
    %445 = vmatprep.subr.mxu0 0.0
    %446 = vmatpush1.msra.mxu0 %v144
    %447 = vmatprep.subr.mxu0 0.0
    %448 = vmatpush1.msra.mxu0 %v145
    %449 = vmatprep.subr.mxu0 0.0
    %450 = vmatpush1.msra.mxu0 %v146
    %451 = vmatprep.subr.mxu0 0.0
    %452 = vmatpush1.msra.mxu0 %v147
    %453 = vmatprep.subr.mxu0 0.0
    %454 = vmatpush1.msra.mxu0 %v148
    %455 = vmatprep.subr.mxu0 0.0
    %456 = vmatpush1.msra.mxu0 %v149
    %457 = vmatprep.subr.mxu0 0.0
    %458 = vmatpush1.msra.mxu0 %v150
    %459 = vmatprep.subr.mxu0 0.0
    %460 = vmatpush1.msra.mxu0 %v151
    %461 = vmatprep.subr.mxu0 0.0
    %462 = vmatpush1.msra.mxu0 %v152
    %463 = vmatprep.subr.mxu0 0.0
    %464 = vmatpush1.msra.mxu0 %v153
    %465 = vmatprep.subr.mxu0 0.0
    %466 = vmatpush1.msra.mxu0 %v154
    %467 = vmatprep.subr.mxu0 0.0
    %468 = vmatpush1.msra.mxu0 %v155
    %469 = vmatprep.subr.mxu0 0.0
    %470 = vmatpush1.msra.mxu0 %v156
    %471 = vmatprep.subr.mxu0 0.0
    %472 = vmatpush1.msra.mxu0 %v157
    %473 = vmatprep.subr.mxu0 0.0
    %474 = vmatpush1.msra.mxu0 %v158
    %475 = vmatprep.subr.mxu0 0.0
    %476 = vmatpush1.msra.mxu0 %v159
    %477 = vmatprep.subr.mxu0 0.0
    %478 = vmatpush1.msra.mxu0 %v160
    %479 = vmatprep.mubr.f32.mxu0 %v196
    %480 = vmatmul.mubr.f32.gmra.mrb[0].mxu0 %v194
    %v481 = vpop.f32.mrb[0].mxu0
    %v482 = vadd.f32 %v412, %v481
    %v483 = vpop.f32.mrb[0].mxu0
    %484 = vdwg.mxu0
    %v485 = vadd.f32 %v30, %v482
    %vm486 = vcmask 115712
    %487 = vst.msk [vmem:[#allocation2] sm:$0x3] %vm486, %v485
    // Predicated region
    $region18: #{tpu_custom_call.1} parent=1 // pred_check
      %p488 = pneg %p17
    $region19: #{tpu_custom_call.1} parent=1 // pred_check_branch
      %490 = sbr.rel (%p488) target = $region21
    $region20: #{tpu_custom_call.1} parent=1 // pred_region
      %v491 = vld [vmem:[#allocation2] sm:$0x3]
      %v492 = vlaneseq
      %v493 = vand.u32 %v492, 127
      %v494 = vsel %vm486, %v491, -inf
      %495 = vmax.xlane.f32.xlu0 %v494
      %v496 = vpop.xlane.xlu0 %495
      %vm497 = vcmp.ge.f32.partialorder %v491, %v496
      %v498 = vsel %vm497, %v493, 15
      %v499 = vsel %vm486, %v498, 2147483647
      %v500 = vand.u32 %v499, 65535
      %v501 = vshra.s32 %v499, 16
      %v502 = vcvt.s32.f32 %v500
      %v503 = vcvt.s32.f32 %v501
      %504 = vmin.xlane.f32.xlu0 %v503
      %v505 = vpop.xlane.xlu0 %504
      %vm506 = vcmp.eq.f32.partialorder %v503, %v505
      %v507 = vsel %vm506, %v502, inf
      %508 = vmin.xlane.f32.xlu0 %v507
      %v509 = vpop.xlane.xlu0 %508
      %v510 = vcvt.f32.s32 %v509
      %v511 = vcvt.f32.s32 %v505
      %v512 = vshll.u32 %v511, 16
      %v513 = vadd.s32 %v512, %v510
      %vm514 = vcmask 1024
      %515 = vst.msk [vmem:[%s4] sm:$0x3] %vm514, %v513
    $region21: #{tpu_custom_call.1} parent=1 // pred_fallthru
      _
    // Predicated region
    $region22: #{tpu_custom_call.1} parent=1 // pred_check
      _
    $region23: #{tpu_custom_call.1} parent=1 // pred_check_branch
      %517 = sbr.rel (0) target = $region25
    $region24: #{tpu_custom_call.1} parent=1 // pred_region
      %s519 = ssub.s32 32, 32
      %520 = vsyncadd [#allocation3], %s519
      %s522 = sshll.u32 [#allocation2], 4
      %s523 = int_to_ptr.vmem [resolvable:$true] %s522
      %525 = dma.vmem_to_hbm [thread:$0]  %s523, 32, %s3, [#allocation3]
    $region25: #{tpu_custom_call.1} parent=1 // pred_fallthru
      _
    // Predicated region
    $region26: #{tpu_custom_call.1} parent=1 // pred_check
      _
    $region27: #{tpu_custom_call.1} parent=1 // pred_check_branch
      %527 = sbr.rel (0) target = $region29
    $region28: #{tpu_custom_call.1} parent=1 // pred_region
      _
    $region29: #{tpu_custom_call.1} parent=1 // pred_fallthru
      _
    // Predicated region
    $region30: #{tpu_custom_call.1} parent=1 // pred_check
      _
    $region31: #{tpu_custom_call.1} parent=1 // pred_check_branch
      %529 = sbr.rel (0) target = $region33
    $region32: #{tpu_custom_call.1} parent=1 // pred_region
      %530 = dma.done [#allocation3], 32
    $region33: #{tpu_custom_call.1} parent=1 // pred_fallthru
      _
    // Predicated region
    $region34: #{tpu_custom_call.1} parent=1 // pred_check
      _
    $region35: #{tpu_custom_call.1} parent=1 // pred_check_branch
      %532 = sbr.rel (0) target = $region37
    $region36: #{tpu_custom_call.1} parent=1 // pred_region
      _
    $region37: #{tpu_custom_call.1} parent=1 // pred_fallthru
      _
    %533 = vsyncpa [#allocation3], 1

</llo_original>
